<compile_context>
chip_gen: v7x
topology: tpu7x:2x2x1
jax: 0.10.0
libtpu: 0.0.40
codegen_flags: <defaults>
</compile_context>

<pallas_src>
import math

import jax
import jax.numpy as jnp
import numpy as np
from jax.experimental import pallas as pl
from jax.experimental.pallas import tpu as pltpu

_INV_SQRT2 = 1.0 / math.sqrt(2.0)
_LN_EPS = 1e-5


def _attn_pool_kernel(x_ref, m_ref, w1_ref, p_ref, o_ref):
    """One grid step processes TB batch rows.

    x_ref:  (TB, S, H)  native dtype (bf16 or f32)  last_hidden_state tile
    m_ref:  (TB, S)     f32   attention mask (0 => masked out), seq on the lane dim
    w1_ref: (H, H)      bf16  Linear(H, H) weight, [in, out], resident MXU operand
    p_ref:  (4, H)      f32   packed rows: [b1; ln_gamma; ln_beta; w2_row]
    o_ref:  (TB, H)     f32   pooled embeddings (lane-dense writeback)
    """
    TB, S, H = x_ref.shape
    x = x_ref[...]                                                # [TB, S, H], native dtype
    p = p_ref[...]                                                # [4, H] f32
    b1, gamma, beta, w2r = p[0:1], p[1:2], p[2:3], p[3:4]         # each (1, H)

    # ---- Linear(H, H): MXU, compute-dtype operands, f32 accumulation. ----
    # Reshape before the cast so the (TB, S) merge is a free relayout for f32 inputs whenever
    # S % 8 == 0 (keep S sublane-aligned: 8 for f32, 16 for bf16 inputs).
    x2 = x.reshape(TB * S, H).astype(w1_ref.dtype)
    h = jnp.dot(x2, w1_ref[...], preferred_element_type=jnp.float32)
    h = h.reshape(TB, S, H) + b1                                  # [TB, S, H] f32

    # ---- LayerNorm (f32 statistics), matches torch.nn.LayerNorm(eps=1e-5). ----
    mu = jnp.mean(h, axis=-1, keepdims=True)
    var = jnp.mean(jnp.square(h - mu), axis=-1, keepdims=True)
    hn = (h - mu) * jax.lax.rsqrt(var + _LN_EPS) * gamma + beta
    # (Further v6e/v7x tune: LN-apply/GELU element math could run in bf16 with f32 stats; kept f32
    #  here for exact-erf fidelity and because v5e has no bf16 VPU/EUP.)

    # ---- GELU (exact erf form = torch.nn.GELU default; erf runs on the EUP slot). ----
    ge = 0.5 * hn * (1.0 + jax.lax.erf(hn * _INV_SQRT2))          # [TB, S, H] f32

    # ---- Linear(H, 1) as a VPU multiply + lane reduction (avoids an N=1 MXU matmul). ----
    # Its bias is omitted on purpose: a constant added to every logit cancels in the softmax.
    logits = jnp.sum(ge * w2r, axis=-1)                           # [TB, S]

    # ---- w[attention_mask == 0] = -inf, softmax over the sequence (lane) dim. ----
    # (Fully-masked rows give NaN, exactly matching the PyTorch module.)
    logits = jnp.where(m_ref[...] == 0.0, -jnp.inf, logits)
    lmax = jnp.max(logits, axis=-1, keepdims=True)
    e = jnp.exp(logits - lmax)
    wsm = e / jnp.sum(e, axis=-1, keepdims=True)                  # [TB, S] f32

    # ---- attention_embeddings = sum_s w[b,s] * x[b,s,:]: multiply in x's dtype, f32 accumulation.
    prod = wsm.astype(x.dtype)[:, :, None] * x                    # [TB, S, H] in x dtype
    o_ref[...] = jnp.sum(prod, axis=1, dtype=jnp.float32)         # [TB, H] f32


def _vmem_capacity_bytes():
    try:
        return int(pltpu.get_tpu_info().vmem_capacity_bytes)
    except Exception:
        return 64 << 20   # conservative fallback = v7x per-TensorCore VMEM


def attention_pooling(last_hidden_state, attention_mask, params, *, tb=None,
                      compute_dtype=jnp.bfloat16):
    """last_hidden_state: [B, S, H] (bf16 or f32), attention_mask: [B, S]. Returns [B, H] f32."""
    x = jnp.asarray(last_hidden_state)            # DMA'd in its native dtype (no f32 upcast pass)
    B, S, H = x.shape
    w1, b1, gamma, beta, w2, b2 = params
    del b2                                         # softmax shift invariance: no effect on output

    w1c = jnp.asarray(w1, compute_dtype)                                   # (H, H), [in, out]
    p4 = jnp.concatenate([jnp.asarray(b1, jnp.float32).reshape(1, H),      # Linear(H,H) bias
                          jnp.asarray(gamma, jnp.float32).reshape(1, H),   # LN weight
                          jnp.asarray(beta, jnp.float32).reshape(1, H),    # LN bias
                          jnp.asarray(w2, jnp.float32).reshape(1, H)],     # Linear(H,1) weight row
                         axis=0)                                           # (4, H) f32
    mask = jnp.asarray(attention_mask, jnp.float32)

    # ---- Generation-aware batch tile TB (VMEM budget + >=2 grid steps for v7x megacore). ----
    x_bytes = jnp.dtype(x.dtype).itemsize
    w_bytes = jnp.dtype(compute_dtype).itemsize
    cap = _vmem_capacity_bytes()                   # 64 MiB/TC on v7x, 128 MiB on v5e/v6e
    usable = max(16 << 20, min(int(cap * 0.75), 112 << 20))
    per_row = (2 * S * H * x_bytes                 # double-buffered x tile
               + 6 * S * H * 4                     # ~6 f32-equiv live intermediates (h/hn/ge/casts/product)
               + 2 * S * 4 + 2 * H * 4)            # mask + output tiles
    fixed = 2 * H * H * w_bytes + 2 * 4 * H * 4 + (2 << 20)
    if tb is None:
        tb = max(1, (usable - fixed) // per_row)
    tb = int(min(int(tb), B))
    if B >= 16:
        tb = min(tb, B // 2)                       # >=2 "parallel" steps -> both v7x TCs get work
    if tb < B:
        tb = max(8, (tb // 8) * 8)                 # blocked (non-full) sublane dims must be 8-aligned
        tb = min(tb, B)
    num_steps = pl.cdiv(B, tb)                     # ragged tail: Pallas pads reads / masks writes

    def _call(single_buffered_params):
        kw = {"pipeline_mode": pl.Buffered(buffer_count=1)} if single_buffered_params else {}
        return pl.pallas_call(
            _attn_pool_kernel,
            out_shape=jax.ShapeDtypeStruct((B, H), jnp.float32),
            grid=(num_steps,),
            in_specs=[
                pl.BlockSpec((tb, S, H), lambda b: (b, 0, 0)),     # last_hidden_state tile
                pl.BlockSpec((tb, S), lambda b: (b, 0)),           # mask tile (seq on lanes)
                pl.BlockSpec((H, H), lambda b: (0, 0), **kw),      # W1, resident
                pl.BlockSpec((4, H), lambda b: (0, 0), **kw),      # packed b1/gamma/beta/w2
            ],
            out_specs=pl.BlockSpec((tb, H), lambda b: (b, 0)),
            compiler_params=pltpu.CompilerParams(
                dimension_semantics=("parallel",),
                vmem_limit_bytes=int(usable),
            ),
        )(x, mask, w1c, p4)

    try:
        return _call(True)
    except Exception:   # pipeline_mode=Buffered(1) unsupported -> default double-buffering
        return _call(False)


def _reference(x, mask, params, compute_dtype=jnp.float32):
    """Pure-JAX reference of the PyTorch module (optionally mirroring the bf16 MXU matmul)."""
    w1, b1, gamma, beta, w2, b2 = params
    x32 = x.astype(jnp.float32)
    h = jnp.dot(x.astype(compute_dtype), w1.astype(compute_dtype),
                preferred_element_type=jnp.float32) + b1.reshape(1, 1, -1)
    mu = jnp.mean(h, axis=-1, keepdims=True)
    var = jnp.mean(jnp.square(h - mu), axis=-1, keepdims=True)
    hn = (h - mu) * jax.lax.rsqrt(var + _LN_EPS) * gamma.reshape(1, 1, -1) + beta.reshape(1, 1, -1)
    ge = 0.5 * hn * (1.0 + jax.lax.erf(hn * _INV_SQRT2))
    w = ge @ w2 + b2                                               # [B, S, 1]
    w = jnp.where(mask[..., None] == 0, -jnp.inf, w)
    w = jax.nn.softmax(w, axis=1)
    return jnp.sum(w * x32, axis=1)


if __name__ == "__main__":
    B, S, H = 2, 8, 32

    key = jax.random.PRNGKey(0)
    k_x, k_w1, k_b1, k_w2, k_b2 = jax.random.split(key, 5)

    # Deterministic synthetic parameters (shapes per AttentionPooling.__init__).
    w1 = jax.random.normal(k_w1, (H, H), jnp.float32) * 0.05    # Linear(H, H) weight, [in, out]
    b1 = jax.random.normal(k_b1, (1, H), jnp.float32) * 0.05    # Linear(H, H) bias
    gamma = jnp.ones((1, H), jnp.float32)                       # LayerNorm weight
    beta = jnp.zeros((1, H), jnp.float32)                       # LayerNorm bias
    w2 = jax.random.normal(k_w2, (H, 1), jnp.float32) * 0.05    # Linear(H, 1) weight, [in, out]
    b2 = jax.random.normal(k_b2, (1, 1), jnp.float32) * 0.05    # Linear(H, 1) bias
    params = (w1, b1, gamma, beta, w2, b2)

    x = jax.random.normal(k_x, (B, S, H), jnp.float32)
    mask = jnp.array(
        [[1] * S,
         [1] * (S - 3) + [0] * 3],
        dtype=jnp.int32,
    )

    # f32 input path: tight check vs a reference mirroring the bf16-MXU / f32-accum matmul,
    # loose check vs the pure-f32 PyTorch-equivalent reference.
    out = jax.block_until_ready(attention_pooling(x, mask, params))
    ref_mixed = _reference(x, mask, params, compute_dtype=jnp.bfloat16)
    np.testing.assert_allclose(np.asarray(out), np.asarray(ref_mixed), rtol=1e-4, atol=1e-4)
    ref_f32 = _reference(x, mask, params, compute_dtype=jnp.float32)
    np.testing.assert_allclose(np.asarray(out), np.asarray(ref_f32), rtol=1e-2, atol=1e-2)

    # Native-bf16 input path (the intended production dtype: halves HBM->VMEM traffic).
    out_bf16 = jax.block_until_ready(attention_pooling(x.astype(jnp.bfloat16), mask, params))
    np.testing.assert_allclose(np.asarray(out_bf16), np.asarray(ref_f32), rtol=2e-2, atol=2e-2)

    print("KERNEL_OK")
</pallas_src>

<mosaic_0001>
module attributes {stable_mosaic.version = 11 : i64} {
  func.func @_attn_pool_kernel(%arg0: i32, %arg1: memref<2x8x32xf32, #tpu.memory_space<vmem>>, %arg2: memref<2x8xf32, #tpu.memory_space<vmem>>, %arg3: memref<32x32xbf16, #tpu.memory_space<vmem>>, %arg4: memref<4x32xf32, #tpu.memory_space<vmem>>, %arg5: memref<2x32xf32, #tpu.memory_space<vmem>>) attributes {dimension_semantics = [#tpu.dimension_semantics<parallel>], iteration_bounds = array<i64: 1>, scalar_prefetch = 0 : i64, scratch_operands = 0 : i64, tpu.core_type = #tpu.core_type<tc>, window_params = [{transform_indices = @transform_0, window_bounds = array<i64: 2, 8, 32>}, {transform_indices = @transform_1, window_bounds = array<i64: 2, 8>}, {pipeline_mode = #tpu.pipeline_mode<synchronous>, transform_indices = @transform_2, window_bounds = array<i64: 32, 32>}, {pipeline_mode = #tpu.pipeline_mode<synchronous>, transform_indices = @transform_3, window_bounds = array<i64: 4, 32>}, {transform_indices = @transform_4, window_bounds = array<i64: 2, 32>}]} {
    %c0 = arith.constant 0 : index
    %c0_0 = arith.constant 0 : index
    %c0_1 = arith.constant 0 : index
    %0 = vector.load %arg1[%c0, %c0_0, %c0_1] : memref<2x8x32xf32, #tpu.memory_space<vmem>>, vector<2x8x32xf32>
    %c0_2 = arith.constant 0 : index
    %c0_3 = arith.constant 0 : index
    %1 = vector.load %arg4[%c0_2, %c0_3] : memref<4x32xf32, #tpu.memory_space<vmem>>, vector<4x32xf32>
    %2 = vector.extract_strided_slice %1 {offsets = [0, 0], sizes = [1, 32], strides = [1, 1]} : vector<4x32xf32> to vector<1x32xf32>
    %3 = vector.extract_strided_slice %1 {offsets = [1, 0], sizes = [1, 32], strides = [1, 1]} : vector<4x32xf32> to vector<1x32xf32>
    %4 = vector.extract_strided_slice %1 {offsets = [2, 0], sizes = [1, 32], strides = [1, 1]} : vector<4x32xf32> to vector<1x32xf32>
    %5 = vector.extract_strided_slice %1 {offsets = [3, 0], sizes = [1, 32], strides = [1, 1]} : vector<4x32xf32> to vector<1x32xf32>
    %6 = vector.shape_cast %0 : vector<2x8x32xf32> to vector<16x32xf32>
    %7 = arith.truncf %6 : vector<16x32xf32> to vector<16x32xbf16>
    %c0_4 = arith.constant 0 : index
    %c0_5 = arith.constant 0 : index
    %8 = vector.load %arg3[%c0_4, %c0_5] : memref<32x32xbf16, #tpu.memory_space<vmem>>, vector<32x32xbf16>
    %cst = arith.constant dense<0.000000e+00> : vector<16x32xf32>
    %9 = tpu.matmul %7, %8, %cst {dimension_numbers = #tpu.dot_dimension_numbers<[1], [0], [0], [1], [0, 0, 1, 1], [], []>} : vector<16x32xbf16>, vector<32x32xbf16>, vector<16x32xf32> -> vector<16x32xf32>
    %10 = vector.shape_cast %9 : vector<16x32xf32> to vector<2x8x32xf32>
    %11 = vector.shape_cast %2 : vector<1x32xf32> to vector<1x1x32xf32>
    %12 = vector.broadcast %11 : vector<1x1x32xf32> to vector<2x8x32xf32>
    %13 = arith.addf %10, %12 : vector<2x8x32xf32>
    %cst_6 = arith.constant dense<0.000000e+00> : vector<2x8xf32>
    %14 = vector.multi_reduction <add>, %13, %cst_6 [2] : vector<2x8x32xf32> to vector<2x8xf32>
    %15 = vector.shape_cast %14 : vector<2x8xf32> to vector<2x8x1xf32>
    %cst_7 = arith.constant 3.200000e+01 : f32
    %16 = vector.broadcast %cst_7 : f32 to vector<2x8x1xf32>
    %17 = arith.divf %15, %16 : vector<2x8x1xf32>
    %18 = vector.broadcast %17 : vector<2x8x1xf32> to vector<2x8x32xf32>
    %19 = arith.subf %13, %18 : vector<2x8x32xf32>
    %20 = arith.mulf %19, %19 : vector<2x8x32xf32>
    %cst_8 = arith.constant dense<0.000000e+00> : vector<2x8xf32>
    %21 = vector.multi_reduction <add>, %20, %cst_8 [2] : vector<2x8x32xf32> to vector<2x8xf32>
    %22 = vector.shape_cast %21 : vector<2x8xf32> to vector<2x8x1xf32>
    %cst_9 = arith.constant 3.200000e+01 : f32
    %23 = vector.broadcast %cst_9 : f32 to vector<2x8x1xf32>
    %24 = arith.divf %22, %23 : vector<2x8x1xf32>
    %25 = vector.broadcast %17 : vector<2x8x1xf32> to vector<2x8x32xf32>
    %26 = arith.subf %13, %25 : vector<2x8x32xf32>
    %cst_10 = arith.constant 9.99999974E-6 : f32
    %27 = vector.broadcast %cst_10 : f32 to vector<2x8x1xf32>
    %28 = arith.addf %24, %27 : vector<2x8x1xf32>
    %29 = math.rsqrt %28 : vector<2x8x1xf32>
    %30 = vector.broadcast %29 : vector<2x8x1xf32> to vector<2x8x32xf32>
    %31 = arith.mulf %26, %30 : vector<2x8x32xf32>
    %32 = vector.shape_cast %3 : vector<1x32xf32> to vector<1x1x32xf32>
    %33 = vector.broadcast %32 : vector<1x1x32xf32> to vector<2x8x32xf32>
    %34 = arith.mulf %31, %33 : vector<2x8x32xf32>
    %35 = vector.shape_cast %4 : vector<1x32xf32> to vector<1x1x32xf32>
    %36 = vector.broadcast %35 : vector<1x1x32xf32> to vector<2x8x32xf32>
    %37 = arith.addf %34, %36 : vector<2x8x32xf32>
    %cst_11 = arith.constant 5.000000e-01 : f32
    %38 = vector.broadcast %cst_11 : f32 to vector<2x8x32xf32>
    %39 = arith.mulf %38, %37 : vector<2x8x32xf32>
    %cst_12 = arith.constant 0.707106769 : f32
    %40 = vector.broadcast %cst_12 : f32 to vector<2x8x32xf32>
    %41 = arith.mulf %37, %40 : vector<2x8x32xf32>
    %42 = math.erf %41 : vector<2x8x32xf32>
    %cst_13 = arith.constant 1.000000e+00 : f32
    %43 = vector.broadcast %cst_13 : f32 to vector<2x8x32xf32>
    %44 = arith.addf %43, %42 : vector<2x8x32xf32>
    %45 = arith.mulf %39, %44 : vector<2x8x32xf32>
    %46 = vector.shape_cast %5 : vector<1x32xf32> to vector<1x1x32xf32>
    %47 = vector.broadcast %46 : vector<1x1x32xf32> to vector<2x8x32xf32>
    %48 = arith.mulf %45, %47 : vector<2x8x32xf32>
    %cst_14 = arith.constant dense<0.000000e+00> : vector<2x8xf32>
    %49 = vector.multi_reduction <add>, %48, %cst_14 [2] : vector<2x8x32xf32> to vector<2x8xf32>
    %c0_15 = arith.constant 0 : index
    %c0_16 = arith.constant 0 : index
    %50 = vector.load %arg2[%c0_15, %c0_16] : memref<2x8xf32, #tpu.memory_space<vmem>>, vector<2x8xf32>
    %cst_17 = arith.constant 0.000000e+00 : f32
    %51 = vector.broadcast %cst_17 : f32 to vector<2x8xf32>
    %52 = arith.cmpf oeq, %50, %51 : vector<2x8xf32>
    %cst_18 = arith.constant 0xFF800000 : f32
    %53 = vector.broadcast %cst_18 : f32 to vector<2x8xf32>
    %54 = arith.select %52, %53, %49 : vector<2x8xi1>, vector<2x8xf32>
    %cst_19 = arith.constant dense<0xFF800000> : vector<2xf32>
    %55 = vector.multi_reduction <maximumf>, %54, %cst_19 [1] : vector<2x8xf32> to vector<2xf32>
    %56 = vector.shape_cast %55 : vector<2xf32> to vector<2x1xf32>
    %57 = vector.broadcast %56 : vector<2x1xf32> to vector<2x8xf32>
    %58 = arith.subf %54, %57 : vector<2x8xf32>
    %59 = math.exp %58 : vector<2x8xf32>
    %cst_20 = arith.constant dense<0.000000e+00> : vector<2xf32>
    %60 = vector.multi_reduction <add>, %59, %cst_20 [1] : vector<2x8xf32> to vector<2xf32>
    %61 = vector.shape_cast %60 : vector<2xf32> to vector<2x1xf32>
    %62 = vector.broadcast %61 : vector<2x1xf32> to vector<2x8xf32>
    %63 = arith.divf %59, %62 : vector<2x8xf32>
    %64 = vector.shape_cast %63 : vector<2x8xf32> to vector<2x8x1xf32>
    %65 = vector.broadcast %64 : vector<2x8x1xf32> to vector<2x8x32xf32>
    %66 = arith.mulf %65, %0 : vector<2x8x32xf32>
    %cst_21 = arith.constant dense<0.000000e+00> : vector<2x32xf32>
    %67 = vector.multi_reduction <add>, %66, %cst_21 [1] : vector<2x8x32xf32> to vector<2x32xf32>
    %c0_22 = arith.constant 0 : index
    %c0_23 = arith.constant 0 : index
    %68 = vector.load %arg5[%c0_22, %c0_23] : memref<2x32xf32, #tpu.memory_space<vmem>>, vector<2x32xf32>
    tpu.vector_store %arg5[%c0_22, %c0_23], %67 {strides = array<i32>} : memref<2x32xf32, #tpu.memory_space<vmem>>, vector<2x32xf32>,
    return
  }
  func.func @transform_0(%arg0: i32) -> (i32, i32, i32) {
    %c0_i32 = arith.constant 0 : i32
    %c0_i32_0 = arith.constant 0 : i32
    %c0_i32_1 = arith.constant 0 : i32
    return %arg0, %c0_i32, %c0_i32_0 : i32, i32, i32
  }
  func.func @transform_1(%arg0: i32) -> (i32, i32) {
    %c0_i32 = arith.constant 0 : i32
    %c0_i32_0 = arith.constant 0 : i32
    return %arg0, %c0_i32 : i32, i32
  }
  func.func @transform_2(%arg0: i32) -> (i32, i32) {
    %c0_i32 = arith.constant 0 : i32
    %c0_i32_0 = arith.constant 0 : i32
    %c0_i32_1 = arith.constant 0 : i32
    return %c0_i32, %c0_i32_0 : i32, i32
  }
  func.func @transform_3(%arg0: i32) -> (i32, i32) {
    %c0_i32 = arith.constant 0 : i32
    %c0_i32_0 = arith.constant 0 : i32
    %c0_i32_1 = arith.constant 0 : i32
    return %c0_i32, %c0_i32_0 : i32, i32
  }
  func.func @transform_4(%arg0: i32) -> (i32, i32) {
    %c0_i32 = arith.constant 0 : i32
    %c0_i32_0 = arith.constant 0 : i32
    return %arg0, %c0_i32 : i32, i32
  }
}

module attributes {stable_mosaic.version = 11 : i64} {
  func.func @_attn_pool_kernel(%arg0: i32, %arg1: memref<2x8x32xf32, #tpu.memory_space<vmem>>, %arg2: memref<2x8xf32, #tpu.memory_space<vmem>>, %arg3: memref<32x32xbf16, #tpu.memory_space<vmem>>, %arg4: memref<4x32xf32, #tpu.memory_space<vmem>>, %arg5: memref<2x32xf32, #tpu.memory_space<vmem>>) attributes {dimension_semantics = [#tpu.dimension_semantics<parallel>], iteration_bounds = array<i64: 1>, scalar_prefetch = 0 : i64, scratch_operands = 0 : i64, tpu.core_type = #tpu.core_type<tc>, window_params = [{transform_indices = @transform_0, window_bounds = array<i64: 2, 8, 32>}, {transform_indices = @transform_1, window_bounds = array<i64: 2, 8>}, {pipeline_mode = #tpu.pipeline_mode<synchronous>, transform_indices = @transform_2, window_bounds = array<i64: 32, 32>}, {pipeline_mode = #tpu.pipeline_mode<synchronous>, transform_indices = @transform_3, window_bounds = array<i64: 4, 32>}, {transform_indices = @transform_4, window_bounds = array<i64: 2, 32>}]} {
    %c0 = arith.constant 0 : index
    %c0_0 = arith.constant 0 : index
    %c0_1 = arith.constant 0 : index
    %0 = vector.load %arg1[%c0, %c0_0, %c0_1] : memref<2x8x32xf32, #tpu.memory_space<vmem>>, vector<2x8x32xf32>
    %c0_2 = arith.constant 0 : index
    %c0_3 = arith.constant 0 : index
    %1 = vector.load %arg4[%c0_2, %c0_3] : memref<4x32xf32, #tpu.memory_space<vmem>>, vector<4x32xf32>
    %2 = vector.extract_strided_slice %1 {offsets = [0, 0], sizes = [1, 32], strides = [1, 1]} : vector<4x32xf32> to vector<1x32xf32>
    %3 = vector.extract_strided_slice %1 {offsets = [1, 0], sizes = [1, 32], strides = [1, 1]} : vector<4x32xf32> to vector<1x32xf32>
    %4 = vector.extract_strided_slice %1 {offsets = [2, 0], sizes = [1, 32], strides = [1, 1]} : vector<4x32xf32> to vector<1x32xf32>
    %5 = vector.extract_strided_slice %1 {offsets = [3, 0], sizes = [1, 32], strides = [1, 1]} : vector<4x32xf32> to vector<1x32xf32>
    %6 = vector.shape_cast %0 : vector<2x8x32xf32> to vector<16x32xf32>
    %7 = arith.truncf %6 : vector<16x32xf32> to vector<16x32xbf16>
    %c0_4 = arith.constant 0 : index
    %c0_5 = arith.constant 0 : index
    %8 = vector.load %arg3[%c0_4, %c0_5] : memref<32x32xbf16, #tpu.memory_space<vmem>>, vector<32x32xbf16>
    %cst = arith.constant dense<0.000000e+00> : vector<16x32xf32>
    %9 = tpu.matmul %7, %8, %cst {dimension_numbers = #tpu.dot_dimension_numbers<[1], [0], [0], [1], [0, 0, 1, 1], [], []>} : vector<16x32xbf16>, vector<32x32xbf16>, vector<16x32xf32> -> vector<16x32xf32>
    %10 = vector.shape_cast %9 : vector<16x32xf32> to vector<2x8x32xf32>
    %11 = vector.shape_cast %2 : vector<1x32xf32> to vector<1x1x32xf32>
    %12 = vector.broadcast %11 : vector<1x1x32xf32> to vector<2x8x32xf32>
    %13 = arith.addf %10, %12 : vector<2x8x32xf32>
    %cst_6 = arith.constant dense<0.000000e+00> : vector<2x8xf32>
    %14 = vector.multi_reduction <add>, %13, %cst_6 [2] : vector<2x8x32xf32> to vector<2x8xf32>
    %15 = vector.shape_cast %14 : vector<2x8xf32> to vector<2x8x1xf32>
    %cst_7 = arith.constant 3.200000e+01 : f32
    %16 = vector.broadcast %cst_7 : f32 to vector<2x8x1xf32>
    %17 = arith.divf %15, %16 : vector<2x8x1xf32>
    %18 = vector.broadcast %17 : vector<2x8x1xf32> to vector<2x8x32xf32>
    %19 = arith.subf %13, %18 : vector<2x8x32xf32>
    %20 = arith.mulf %19, %19 : vector<2x8x32xf32>
    %cst_8 = arith.constant dense<0.000000e+00> : vector<2x8xf32>
    %21 = vector.multi_reduction <add>, %20, %cst_8 [2] : vector<2x8x32xf32> to vector<2x8xf32>
    %22 = vector.shape_cast %21 : vector<2x8xf32> to vector<2x8x1xf32>
    %cst_9 = arith.constant 3.200000e+01 : f32
    %23 = vector.broadcast %cst_9 : f32 to vector<2x8x1xf32>
    %24 = arith.divf %22, %23 : vector<2x8x1xf32>
    %25 = vector.broadcast %17 : vector<2x8x1xf32> to vector<2x8x32xf32>
    %26 = arith.subf %13, %25 : vector<2x8x32xf32>
    %cst_10 = arith.constant 9.99999974E-6 : f32
    %27 = vector.broadcast %cst_10 : f32 to vector<2x8x1xf32>
    %28 = arith.addf %24, %27 : vector<2x8x1xf32>
    %29 = math.rsqrt %28 : vector<2x8x1xf32>
    %30 = vector.broadcast %29 : vector<2x8x1xf32> to vector<2x8x32xf32>
    %31 = arith.mulf %26, %30 : vector<2x8x32xf32>
    %32 = vector.shape_cast %3 : vector<1x32xf32> to vector<1x1x32xf32>
    %33 = vector.broadcast %32 : vector<1x1x32xf32> to vector<2x8x32xf32>
    %34 = arith.mulf %31, %33 : vector<2x8x32xf32>
    %35 = vector.shape_cast %4 : vector<1x32xf32> to vector<1x1x32xf32>
    %36 = vector.broadcast %35 : vector<1x1x32xf32> to vector<2x8x32xf32>
    %37 = arith.addf %34, %36 : vector<2x8x32xf32>
    %cst_11 = arith.constant 5.000000e-01 : f32
    %38 = vector.broadcast %cst_11 : f32 to vector<2x8x32xf32>
    %39 = arith.mulf %38, %37 : vector<2x8x32xf32>
    %cst_12 = arith.constant 0.707106769 : f32
    %40 = vector.broadcast %cst_12 : f32 to vector<2x8x32xf32>
    %41 = arith.mulf %37, %40 : vector<2x8x32xf32>
    %42 = math.erf %41 : vector<2x8x32xf32>
    %cst_13 = arith.constant 1.000000e+00 : f32
    %43 = vector.broadcast %cst_13 : f32 to vector<2x8x32xf32>
    %44 = arith.addf %43, %42 : vector<2x8x32xf32>
    %45 = arith.mulf %39, %44 : vector<2x8x32xf32>
    %46 = vector.shape_cast %5 : vector<1x32xf32> to vector<1x1x32xf32>
    %47 = vector.broadcast %46 : vector<1x1x32xf32> to vector<2x8x32xf32>
    %48 = arith.mulf %45, %47 : vector<2x8x32xf32>
    %cst_14 = arith.constant dense<0.000000e+00> : vector<2x8xf32>
    %49 = vector.multi_reduction <add>, %48, %cst_14 [2] : vector<2x8x32xf32> to vector<2x8xf32>
    %c0_15 = arith.constant 0 : index
    %c0_16 = arith.constant 0 : index
    %50 = vector.load %arg2[%c0_15, %c0_16] : memref<2x8xf32, #tpu.memory_space<vmem>>, vector<2x8xf32>
    %cst_17 = arith.constant 0.000000e+00 : f32
    %51 = vector.broadcast %cst_17 : f32 to vector<2x8xf32>
    %52 = arith.cmpf oeq, %50, %51 : vector<2x8xf32>
    %cst_18 = arith.constant 0xFF800000 : f32
    %53 = vector.broadcast %cst_18 : f32 to vector<2x8xf32>
    %54 = arith.select %52, %53, %49 : vector<2x8xi1>, vector<2x8xf32>
    %cst_19 = arith.constant dense<0xFF800000> : vector<2xf32>
    %55 = vector.multi_reduction <maximumf>, %54, %cst_19 [1] : vector<2x8xf32> to vector<2xf32>
    %56 = vector.shape_cast %55 : vector<2xf32> to vector<2x1xf32>
    %57 = vector.broadcast %56 : vector<2x1xf32> to vector<2x8xf32>
    %58 = arith.subf %54, %57 : vector<2x8xf32>
    %59 = math.exp %58 : vector<2x8xf32>
    %cst_20 = arith.constant dense<0.000000e+00> : vector<2xf32>
    %60 = vector.multi_reduction <add>, %59, %cst_20 [1] : vector<2x8xf32> to vector<2xf32>
    %61 = vector.shape_cast %60 : vector<2xf32> to vector<2x1xf32>
    %62 = vector.broadcast %61 : vector<2x1xf32> to vector<2x8xf32>
    %63 = arith.divf %59, %62 : vector<2x8xf32>
    %64 = vector.shape_cast %63 : vector<2x8xf32> to vector<2x8x1xf32>
    %65 = vector.broadcast %64 : vector<2x8x1xf32> to vector<2x8x32xf32>
    %66 = arith.mulf %65, %0 : vector<2x8x32xf32>
    %cst_21 = arith.constant dense<0.000000e+00> : vector<2x32xf32>
    %67 = vector.multi_reduction <add>, %66, %cst_21 [1] : vector<2x8x32xf32> to vector<2x32xf32>
    %c0_22 = arith.constant 0 : index
    %c0_23 = arith.constant 0 : index
    %68 = vector.load %arg5[%c0_22, %c0_23] : memref<2x32xf32, #tpu.memory_space<vmem>>, vector<2x32xf32>
    tpu.vector_store %arg5[%c0_22, %c0_23], %67 {strides = array<i32>} : memref<2x32xf32, #tpu.memory_space<vmem>>, vector<2x32xf32>,
    return
  }
  func.func @transform_0(%arg0: i32) -> (i32, i32, i32) {
    %c0_i32 = arith.constant 0 : i32
    %c0_i32_0 = arith.constant 0 : i32
    %c0_i32_1 = arith.constant 0 : i32
    return %arg0, %c0_i32, %c0_i32_0 : i32, i32, i32
  }
  func.func @transform_1(%arg0: i32) -> (i32, i32) {
    %c0_i32 = arith.constant 0 : i32
    %c0_i32_0 = arith.constant 0 : i32
    return %arg0, %c0_i32 : i32, i32
  }
  func.func @transform_2(%arg0: i32) -> (i32, i32) {
    %c0_i32 = arith.constant 0 : i32
    %c0_i32_0 = arith.constant 0 : i32
    %c0_i32_1 = arith.constant 0 : i32
    return %c0_i32, %c0_i32_0 : i32, i32
  }
  func.func @transform_3(%arg0: i32) -> (i32, i32) {
    %c0_i32 = arith.constant 0 : i32
    %c0_i32_0 = arith.constant 0 : i32
    %c0_i32_1 = arith.constant 0 : i32
    return %c0_i32, %c0_i32_0 : i32, i32
  }
  func.func @transform_4(%arg0: i32) -> (i32, i32) {
    %c0_i32 = arith.constant 0 : i32
    %c0_i32_0 = arith.constant 0 : i32
    return %arg0, %c0_i32 : i32, i32
  }
}

</mosaic_0001>

<llo_original>
// kernel: tpu_custom_call.1
$region0: #{tpu_custom_call.1}
  #allocation0 [shape = 'u32[]', space=smem, size = 0x4, offset = 0x4, fixed_abs, tag = 'smem constant byte address 0x4 - core index']
  #allocation1 [shape = 'u32[144,128]{1,0:T(1,128)}', space=vmem, size = 0x12000, scoped, tag = 'internal scratch']
  %s0 = inlined_call_operand.hbm [shape: f32[2,8,32], index: 0, kind: input, shape index: {}]
  %s1 = inlined_call_operand.vmem [shape: f32[2,8], index: 1, kind: input, shape index: {}]
  %s2 = inlined_call_operand.hbm [shape: bf16[32,32], index: 2, kind: input, shape index: {}]
  %s3 = inlined_call_operand.vmem [shape: f32[4,32], index: 3, kind: input, shape index: {}]
  %s4 = inlined_call_operand.hbm [shape: f32[2,32], index: 4, kind: output, shape index: {}]
  %s5 = sld [smem:[#allocation0]]
  $region34: #{tpu_custom_call.1} parent=0
    _
  %s7 = ssub.s32 1, %s5
  %s8 = scalar_select 0, %s7, %s5
  $region1: #{tpu_custom_call.1} parent=0
    #allocation2 [shape = 'u8[8192]{0}', space=vmem, size = 0x2000, scoped, tag = 'input window, operand 0, single buffered']
    #allocation3 [shape = 's32[1]{0}', space=sflag, size = 0x4, scoped, tag = 'scoped memory for tpu_custom_call.1']
    #allocation4 [shape = 's32[1]{0}', space=sflag, size = 0x4, scoped, tag = 'scoped memory for tpu_custom_call.1']
    #allocation5 [shape = 'u8[8192]{0}', space=vmem, size = 0x2000, scoped, tag = 'input window, operand 2, single buffered']
    #allocation6 [shape = 's32[1]{0}', space=sflag, size = 0x4, scoped, tag = 'scoped memory for tpu_custom_call.1']
    #allocation7 [shape = 'u8[1024]{0}', space=vmem, size = 0x400, scoped, tag = 'output window, operand 0, single buffered']
    %9 = vsyncpa [#allocation3], 0
    %10 = vsyncpa [#allocation6], 0
    %11 = vsyncpa [#allocation4], 0
    // Predicated region
    $region2: #{tpu_custom_call.1} parent=1 // pred_check
      _
    $region3: #{tpu_custom_call.1} parent=1 // pred_check_branch
      %13 = sbr.rel (0) target = $region5
    $region4: #{tpu_custom_call.1} parent=1 // pred_region
      %s15 = ssub.s32 256, 256
      %16 = vsyncadd [#allocation3], %s15
      %s17 = sshll.u32 [#allocation2], 4
      %s18 = int_to_ptr.vmem [resolvable:$true] %s17
      %23 = dma.hbm_to_vmem [thread:$0]  %s0, 256, %s18, [#allocation3], 128, 128, 8
    $region5: #{tpu_custom_call.1} parent=1 // pred_fallthru
      _
    // Predicated region
    $region6: #{tpu_custom_call.1} parent=1 // pred_check
      _
    $region7: #{tpu_custom_call.1} parent=1 // pred_check_branch
      %25 = sbr.rel (0) target = $region9
    $region8: #{tpu_custom_call.1} parent=1 // pred_region
      _
    $region9: #{tpu_custom_call.1} parent=1 // pred_fallthru
      _
    // Predicated region
    $region10: #{tpu_custom_call.1} parent=1 // pred_check
      _
    $region11: #{tpu_custom_call.1} parent=1 // pred_check_branch
      %27 = sbr.rel (0) target = $region13
    $region12: #{tpu_custom_call.1} parent=1 // pred_region
      %s29 = ssub.s32 256, 256
      %30 = vsyncadd [#allocation6], %s29
      %s31 = sshll.u32 [#allocation5], 4
      %s32 = int_to_ptr.vmem [resolvable:$true] %s31
      %37 = dma.hbm_to_vmem [thread:$0]  %s2, 256, %s32, [#allocation6], 64, 64, 4
    $region13: #{tpu_custom_call.1} parent=1 // pred_fallthru
      _
    // Predicated region
    $region14: #{tpu_custom_call.1} parent=1 // pred_check
      _
    $region15: #{tpu_custom_call.1} parent=1 // pred_check_branch
      %39 = sbr.rel (0) target = $region17
    $region16: #{tpu_custom_call.1} parent=1 // pred_region
      _
    $region17: #{tpu_custom_call.1} parent=1 // pred_fallthru
      _
    // Predicated region
    $region18: #{tpu_custom_call.1} parent=1 // pred_check
      _
    $region19: #{tpu_custom_call.1} parent=1 // pred_check_branch
      %41 = sbr.rel (0) target = $region21
    $region20: #{tpu_custom_call.1} parent=1 // pred_region
      %42 = dma.done [#allocation3], 256
    $region21: #{tpu_custom_call.1} parent=1 // pred_fallthru
      _
    // Predicated region
    $region22: #{tpu_custom_call.1} parent=1 // pred_check
      _
    $region23: #{tpu_custom_call.1} parent=1 // pred_check_branch
      %44 = sbr.rel (0) target = $region25
    $region24: #{tpu_custom_call.1} parent=1 // pred_region
      %45 = dma.done [#allocation6], 256
    $region25: #{tpu_custom_call.1} parent=1 // pred_fallthru
      _
    %v47 = vld [vmem:[#allocation2] sm:$0xff]
    %v48 = vld [vmem:[#allocation2 + $0x8] sm:$0xff]
    %v49 = vld [vmem:[%s3] sm:$0xf]
    %v50 = vpack.c.bf16 %v48, %v47
    %v51 = vld [vmem:[#allocation5] sm:$0xf]
    %v52 = vld [vmem:[#allocation5 + $0x4] sm:$0xf]
    %v53 = vld [vmem:[#allocation5 + $0x8] sm:$0xf]
    %v54 = vld [vmem:[#allocation5 + $0xc] sm:$0xf]
    %v59 = vunpack.c.l.b16 %v51
    %v60 = vunpack.c.l.b16 %v52
    %v61 = vunpack.c.l.b16 %v53
    %v62 = vunpack.c.l.b16 %v54
    %v63 = vpack.c.b16 %v60, %v59
    %v64 = vpack.c.b16 %v62, %v61
    %vm67 = vcmask 261120
    %v69 = vsel %vm67, %v50, 0
    %71 = vmatprep.subr.bf16.mxu0 0
    %72 = vmatpush1.bf16.msra.mxu0 %v63
    %73 = vmatprep.subr.bf16.mxu0 0
    %74 = vmatpush1.bf16.msra.mxu0 %v64
    %75 = vmatprep.subr.bf16.mxu0 0
    %76 = vmatpush1.bf16.msra.mxu0 0
    %77 = vmatprep.subr.bf16.mxu0 0
    %78 = vmatpush1.bf16.msra.mxu0 0
    %79 = vmatprep.subr.bf16.mxu0 0
    %80 = vmatpush1.bf16.msra.mxu0 0
    %81 = vmatprep.subr.bf16.mxu0 0
    %82 = vmatpush1.bf16.msra.mxu0 0
    %83 = vmatprep.subr.bf16.mxu0 0
    %84 = vmatpush1.bf16.msra.mxu0 0
    %85 = vmatprep.subr.bf16.mxu0 0
    %86 = vmatpush1.bf16.msra.mxu0 0
    %87 = vmatprep.subr.bf16.mxu0 0
    %88 = vmatpush1.bf16.msra.mxu0 0
    %89 = vmatprep.subr.bf16.mxu0 0
    %90 = vmatpush1.bf16.msra.mxu0 0
    %91 = vmatprep.subr.bf16.mxu0 0
    %92 = vmatpush1.bf16.msra.mxu0 0
    %93 = vmatprep.subr.bf16.mxu0 0
    %94 = vmatpush1.bf16.msra.mxu0 0
    %95 = vmatprep.subr.bf16.mxu0 0
    %96 = vmatpush1.bf16.msra.mxu0 0
    %97 = vmatprep.subr.bf16.mxu0 0
    %98 = vmatpush1.bf16.msra.mxu0 0
    %99 = vmatprep.subr.bf16.mxu0 0
    %100 = vmatpush1.bf16.msra.mxu0 0
    %101 = vmatprep.subr.bf16.mxu0 0
    %102 = vmatpush1.bf16.msra.mxu0 0
    %103 = vmatprep.mubr.bf16.mxu0 0
    %104 = vmatmul.mubr.bf16.gmra.mrb[0].mxu0 %v69
    %v105 = vpop.f32.mrb[0].mxu0
    %v106 = vadd.f32 0.0, %v105
    %v107 = vpop.f32.mrb[0].mxu0
    %v108 = vpop.f32.mrb[0].mxu0
    %v109 = vadd.f32 0.0, %v108
    %v110 = vpop.f32.mrb[0].mxu0
    %111 = vdwg.mxu0
    %v112 = vlaneseq
    %v113 = vshrl.u32 %v112, 7
    %v114 = vsub.s32 0, %v113
    %v115 = vrot.slane %v49, %v114
    %v116 = vadd.f32 %v106, %v115
    %v117 = vadd.f32 %v109, %v115
    %v118 = vsel %vm67, %v116, 0.0
    %119 = vadd.xlane.f32.xlu0 %v118
    %v120 = vpop.xlane.xlu0 %119
    %v121 = vsel %vm67, %v117, 0.0
    %122 = vadd.xlane.f32.xlu0 %v121
    %v123 = vpop.xlane.xlu0 %122
    %v124 = vrcp.pop 32.0
    %v125 = vmul.f32 %v120, %v124
    %v126 = vmul.f32 %v123, %v124
    %v127 = vsub.f32 %v116, %v125
    %v128 = vsub.f32 %v117, %v126
    %v129 = vmul.f32 %v127, %v127
    %v130 = vmul.f32 %v128, %v128
    %v131 = vsel %vm67, %v129, 0.0
    %132 = vadd.xlane.f32.xlu0 %v131
    %v133 = vpop.xlane.xlu0 %132
    %v134 = vsel %vm67, %v130, 0.0
    %135 = vadd.xlane.f32.xlu0 %v134
    %v136 = vpop.xlane.xlu0 %135
    %v137 = vmul.f32 %v133, %v124
    %v138 = vmul.f32 %v136, %v124
    %v139 = vadd.f32 %v137, 1e-05
    %v140 = vadd.f32 %v138, 1e-05
    %v141 = vrsqrt.pop %v139
    %v142 = vrsqrt.pop %v140
    %v143 = vmul.f32 %v127, %v141
    %v144 = vmul.f32 %v128, %v142
    %v145 = vlaneseq
    %v146 = vshrl.u32 %v145, 7
    %v147 = vsub.s32 1, %v146
    %v148 = vrot.slane %v49, %v147
    %v149 = vmul.f32 %v143, %v148
    %v150 = vmul.f32 %v144, %v148
    %v151 = vlaneseq
    %v152 = vshrl.u32 %v151, 7
    %v153 = vsub.s32 2, %v152
    %v154 = vrot.slane %v49, %v153
    %v155 = vadd.f32 %v149, %v154
    %v156 = vadd.f32 %v150, %v154
    %v157 = vmul.f32 %v155, 0.5
    %v158 = vmul.f32 %v156, 0.5
    %v159 = vmul.f32 %v155, 0.70710677
    %v160 = vmul.f32 %v156, 0.70710677
    %v161 = verf.f32.pop %v159
    %v162 = verf.f32.pop %v160
    %v163 = vadd.f32 %v161, 1.0
    %v164 = vadd.f32 %v162, 1.0
    %v165 = vmul.f32 %v157, %v163
    %v166 = vmul.f32 %v158, %v164
    %v167 = vlaneseq
    %v168 = vshrl.u32 %v167, 7
    %v169 = vsub.s32 3, %v168
    %v170 = vrot.slane %v49, %v169
    %v171 = vmul.f32 %v165, %v170
    %v172 = vmul.f32 %v166, %v170
    %v173 = vsel %vm67, %v171, 0.0
    %174 = vadd.xlane.f32.xlu0 %v173
    %v175 = vpop.xlane.xlu0 %174
    %v176 = vsel %vm67, %v172, 0.0
    %177 = vadd.xlane.f32.xlu0 %v176
    %v178 = vpop.xlane.xlu0 %177
    %v179 = vld [vmem:[%s1] sm:$0x3]
    %vm180 = vcmp.eq.f32.partialorder %v179, 0.0
    %v183 = vlaneseq
    %v184 = vand.u32 %v183, 127
    %v185 = vlaneseq
    %v186 = vshrl.u32 %v185, 7
    %v187 = vsub.s32 %v184, %v186
    %v188 = vrot.slane %v175, %v187
    %v189 = vlaneseq
    %v190 = vshrl.u32 %v189, 7
    %v191 = vsub.s32 %v184, %v190
    %v192 = vrot.slane %v178, %v191
    %vm193 = vcmask 1041409
    %v194 = vsel %vm193, %v192, %v188
    %v196 = vsel %vm180, -inf, %v194
    %vm197 = vcmask 58368
    %v198 = vsel %vm197, %v196, -inf
    %199 = vmax.xlane.f32.xlu0 %v198
    %v200 = vpop.xlane.xlu0 %199
    %v201 = vsub.f32 %v196, %v200
    %v202 = vmul.f32 %v201, 1.442695
    %v203 = vpow.pop %v202
    %v204 = vsel %vm197, %v203, 0.0
    %205 = vadd.xlane.f32.xlu0 %v204
    %v206 = vpop.xlane.xlu0 %205
    %v207 = vrcp.pop %v206
    %v208 = vmul.f32 %v203, %v207
    %v209 = vlaneseq
    %v210 = vshrl.u32 %v209, 7
    %v211 = vsub.s32 0, %v210
    %v212 = vrot.slane %v208, %v211
    %214 = vbcast.lane.b32.xlu0 %v212, 256
    %v215 = vpop.permute.xlu0 %214
    %v216 = vlaneseq
    %v217 = vshrl.u32 %v216, 7
    %v218 = vsub.s32 1, %v217
    %v219 = vrot.slane %v208, %v218
    %221 = vbcast.lane.b32.xlu0 %v219, 256
    %v222 = vpop.permute.xlu0 %221
    %v223 = vmul.f32 %v215, %v47
    %v224 = vmul.f32 %v222, %v48
    %v225 = vsel %vm67, %v223, 0.0
    %v226 = vrot.slane %v225, 4
    %v227 = vadd.f32 %v225, %v226
    %v228 = vrot.slane %v227, 2
    %v229 = vadd.f32 %v227, %v228
    %v230 = vrot.slane %v229, 1
    %v231 = vadd.f32 %v229, %v230
    %v232 = vsel %vm67, %v224, 0.0
    %v233 = vrot.slane %v232, 4
    %v234 = vadd.f32 %v232, %v233
    %v235 = vrot.slane %v234, 2
    %v236 = vadd.f32 %v234, %v235
    %v237 = vrot.slane %v236, 1
    %v238 = vadd.f32 %v236, %v237
    %v241 = vsel %vm193, %v238, %v231
    %vm243 = vcmask 254976
    %244 = vst.msk [vmem:[#allocation7] sm:$0x3] %vm243, %v241
    // Predicated region
    $region26: #{tpu_custom_call.1} parent=1 // pred_check
      _
    $region27: #{tpu_custom_call.1} parent=1 // pred_check_branch
      %246 = sbr.rel (0) target = $region29
    $region28: #{tpu_custom_call.1} parent=1 // pred_region
      %s248 = ssub.s32 32, 32
      %249 = vsyncadd [#allocation4], %s248
      %s251 = sshll.u32 [#allocation7], 4
      %s252 = int_to_ptr.vmem [resolvable:$true] %s251
      %254 = dma.vmem_to_hbm [thread:$0]  %s252, 32, %s4, [#allocation4]
    $region29: #{tpu_custom_call.1} parent=1 // pred_fallthru
      _
    // Predicated region
    $region30: #{tpu_custom_call.1} parent=1 // pred_check
      _
    $region31: #{tpu_custom_call.1} parent=1 // pred_check_branch
      %256 = sbr.rel (0) target = $region33
    $region32: #{tpu_custom_call.1} parent=1 // pred_region
      %257 = dma.done [#allocation4], 32
    $region33: #{tpu_custom_call.1} parent=1 // pred_fallthru
      _
    %258 = vsyncpa [#allocation3], 1
    %259 = vsyncpa [#allocation6], 1
    %260 = vsyncpa [#allocation4], 1

// kernel: tpu_custom_call.1
$region0: #{tpu_custom_call.1}
  #allocation0 [shape = 'u32[]', space=smem, size = 0x4, offset = 0x4, fixed_abs, tag = 'smem constant byte address 0x4 - core index']
  #allocation1 [shape = 'u32[144,128]{1,0:T(1,128)}', space=vmem, size = 0x12000, scoped, tag = 'internal scratch']
  %s0 = inlined_call_operand.hbm [shape: f32[2,8,32], index: 0, kind: input, shape index: {}]
  %s1 = inlined_call_operand.vmem [shape: f32[2,8], index: 1, kind: input, shape index: {}]
  %s2 = inlined_call_operand.hbm [shape: bf16[32,32], index: 2, kind: input, shape index: {}]
  %s3 = inlined_call_operand.vmem [shape: f32[4,32], index: 3, kind: input, shape index: {}]
  %s4 = inlined_call_operand.hbm [shape: f32[2,32], index: 4, kind: output, shape index: {}]
  %s5 = sld [smem:[#allocation0]]
  $region34: #{tpu_custom_call.1} parent=0
    _
  %s7 = ssub.s32 1, %s5
  %s8 = scalar_select 0, %s7, %s5
  $region1: #{tpu_custom_call.1} parent=0
    #allocation2 [shape = 'u8[8192]{0}', space=vmem, size = 0x2000, scoped, tag = 'input window, operand 0, single buffered']
    #allocation3 [shape = 's32[1]{0}', space=sflag, size = 0x4, scoped, tag = 'scoped memory for tpu_custom_call.1']
    #allocation4 [shape = 's32[1]{0}', space=sflag, size = 0x4, scoped, tag = 'scoped memory for tpu_custom_call.1']
    #allocation5 [shape = 'u8[8192]{0}', space=vmem, size = 0x2000, scoped, tag = 'input window, operand 2, single buffered']
    #allocation6 [shape = 's32[1]{0}', space=sflag, size = 0x4, scoped, tag = 'scoped memory for tpu_custom_call.1']
    #allocation7 [shape = 'u8[1024]{0}', space=vmem, size = 0x400, scoped, tag = 'output window, operand 0, single buffered']
    %9 = vsyncpa [#allocation3], 0
    %10 = vsyncpa [#allocation6], 0
    %11 = vsyncpa [#allocation4], 0
    // Predicated region
    $region2: #{tpu_custom_call.1} parent=1 // pred_check
      _
    $region3: #{tpu_custom_call.1} parent=1 // pred_check_branch
      %13 = sbr.rel (0) target = $region5
    $region4: #{tpu_custom_call.1} parent=1 // pred_region
      %s15 = ssub.s32 256, 256
      %16 = vsyncadd [#allocation3], %s15
      %s17 = sshll.u32 [#allocation2], 4
      %s18 = int_to_ptr.vmem [resolvable:$true] %s17
      %23 = dma.hbm_to_vmem [thread:$0]  %s0, 256, %s18, [#allocation3], 128, 128, 8
    $region5: #{tpu_custom_call.1} parent=1 // pred_fallthru
      _
    // Predicated region
    $region6: #{tpu_custom_call.1} parent=1 // pred_check
      _
    $region7: #{tpu_custom_call.1} parent=1 // pred_check_branch
      %25 = sbr.rel (0) target = $region9
    $region8: #{tpu_custom_call.1} parent=1 // pred_region
      _
    $region9: #{tpu_custom_call.1} parent=1 // pred_fallthru
      _
    // Predicated region
    $region10: #{tpu_custom_call.1} parent=1 // pred_check
      _
    $region11: #{tpu_custom_call.1} parent=1 // pred_check_branch
      %27 = sbr.rel (0) target = $region13
    $region12: #{tpu_custom_call.1} parent=1 // pred_region
      %s29 = ssub.s32 256, 256
      %30 = vsyncadd [#allocation6], %s29
      %s31 = sshll.u32 [#allocation5], 4
      %s32 = int_to_ptr.vmem [resolvable:$true] %s31
      %37 = dma.hbm_to_vmem [thread:$0]  %s2, 256, %s32, [#allocation6], 64, 64, 4
    $region13: #{tpu_custom_call.1} parent=1 // pred_fallthru
      _
    // Predicated region
    $region14: #{tpu_custom_call.1} parent=1 // pred_check
      _
    $region15: #{tpu_custom_call.1} parent=1 // pred_check_branch
      %39 = sbr.rel (0) target = $region17
    $region16: #{tpu_custom_call.1} parent=1 // pred_region
      _
    $region17: #{tpu_custom_call.1} parent=1 // pred_fallthru
      _
    // Predicated region
    $region18: #{tpu_custom_call.1} parent=1 // pred_check
      _
    $region19: #{tpu_custom_call.1} parent=1 // pred_check_branch
      %41 = sbr.rel (0) target = $region21
    $region20: #{tpu_custom_call.1} parent=1 // pred_region
      %42 = dma.done [#allocation3], 256
    $region21: #{tpu_custom_call.1} parent=1 // pred_fallthru
      _
    // Predicated region
    $region22: #{tpu_custom_call.1} parent=1 // pred_check
      _
    $region23: #{tpu_custom_call.1} parent=1 // pred_check_branch
      %44 = sbr.rel (0) target = $region25
    $region24: #{tpu_custom_call.1} parent=1 // pred_region
      %45 = dma.done [#allocation6], 256
    $region25: #{tpu_custom_call.1} parent=1 // pred_fallthru
      _
    %v47 = vld [vmem:[#allocation2] sm:$0xff]
    %v48 = vld [vmem:[#allocation2 + $0x8] sm:$0xff]
    %v49 = vld [vmem:[%s3] sm:$0xf]
    %v50 = vpack.c.bf16 %v48, %v47
    %v51 = vld [vmem:[#allocation5] sm:$0xf]
    %v52 = vld [vmem:[#allocation5 + $0x4] sm:$0xf]
    %v53 = vld [vmem:[#allocation5 + $0x8] sm:$0xf]
    %v54 = vld [vmem:[#allocation5 + $0xc] sm:$0xf]
    %v59 = vunpack.c.l.b16 %v51
    %v60 = vunpack.c.l.b16 %v52
    %v61 = vunpack.c.l.b16 %v53
    %v62 = vunpack.c.l.b16 %v54
    %v63 = vpack.c.b16 %v60, %v59
    %v64 = vpack.c.b16 %v62, %v61
    %vm67 = vcmask 261120
    %v69 = vsel %vm67, %v50, 0
    %71 = vmatprep.subr.bf16.mxu0 0
    %72 = vmatpush1.bf16.msra.mxu0 %v63
    %73 = vmatprep.subr.bf16.mxu0 0
    %74 = vmatpush1.bf16.msra.mxu0 %v64
    %75 = vmatprep.subr.bf16.mxu0 0
    %76 = vmatpush1.bf16.msra.mxu0 0
    %77 = vmatprep.subr.bf16.mxu0 0
    %78 = vmatpush1.bf16.msra.mxu0 0
    %79 = vmatprep.subr.bf16.mxu0 0
    %80 = vmatpush1.bf16.msra.mxu0 0
    %81 = vmatprep.subr.bf16.mxu0 0
    %82 = vmatpush1.bf16.msra.mxu0 0
    %83 = vmatprep.subr.bf16.mxu0 0
    %84 = vmatpush1.bf16.msra.mxu0 0
    %85 = vmatprep.subr.bf16.mxu0 0
    %86 = vmatpush1.bf16.msra.mxu0 0
    %87 = vmatprep.subr.bf16.mxu0 0
    %88 = vmatpush1.bf16.msra.mxu0 0
    %89 = vmatprep.subr.bf16.mxu0 0
    %90 = vmatpush1.bf16.msra.mxu0 0
    %91 = vmatprep.subr.bf16.mxu0 0
    %92 = vmatpush1.bf16.msra.mxu0 0
    %93 = vmatprep.subr.bf16.mxu0 0
    %94 = vmatpush1.bf16.msra.mxu0 0
    %95 = vmatprep.subr.bf16.mxu0 0
    %96 = vmatpush1.bf16.msra.mxu0 0
    %97 = vmatprep.subr.bf16.mxu0 0
    %98 = vmatpush1.bf16.msra.mxu0 0
    %99 = vmatprep.subr.bf16.mxu0 0
    %100 = vmatpush1.bf16.msra.mxu0 0
    %101 = vmatprep.subr.bf16.mxu0 0
    %102 = vmatpush1.bf16.msra.mxu0 0
    %103 = vmatprep.mubr.bf16.mxu0 0
    %104 = vmatmul.mubr.bf16.gmra.mrb[0].mxu0 %v69
    %v105 = vpop.f32.mrb[0].mxu0
    %v106 = vadd.f32 0.0, %v105
    %v107 = vpop.f32.mrb[0].mxu0
    %v108 = vpop.f32.mrb[0].mxu0
    %v109 = vadd.f32 0.0, %v108
    %v110 = vpop.f32.mrb[0].mxu0
    %111 = vdwg.mxu0
    %v112 = vlaneseq
    %v113 = vshrl.u32 %v112, 7
    %v114 = vsub.s32 0, %v113
    %v115 = vrot.slane %v49, %v114
    %v116 = vadd.f32 %v106, %v115
    %v117 = vadd.f32 %v109, %v115
    %v118 = vsel %vm67, %v116, 0.0
    %119 = vadd.xlane.f32.xlu0 %v118
    %v120 = vpop.xlane.xlu0 %119
    %v121 = vsel %vm67, %v117, 0.0
    %122 = vadd.xlane.f32.xlu0 %v121
    %v123 = vpop.xlane.xlu0 %122
    %v124 = vrcp.pop 32.0
    %v125 = vmul.f32 %v120, %v124
    %v126 = vmul.f32 %v123, %v124
    %v127 = vsub.f32 %v116, %v125
    %v128 = vsub.f32 %v117, %v126
    %v129 = vmul.f32 %v127, %v127
    %v130 = vmul.f32 %v128, %v128
    %v131 = vsel %vm67, %v129, 0.0
    %132 = vadd.xlane.f32.xlu0 %v131
    %v133 = vpop.xlane.xlu0 %132
    %v134 = vsel %vm67, %v130, 0.0
    %135 = vadd.xlane.f32.xlu0 %v134
    %v136 = vpop.xlane.xlu0 %135
    %v137 = vmul.f32 %v133, %v124
    %v138 = vmul.f32 %v136, %v124
    %v139 = vadd.f32 %v137, 1e-05
    %v140 = vadd.f32 %v138, 1e-05
    %v141 = vrsqrt.pop %v139
    %v142 = vrsqrt.pop %v140
    %v143 = vmul.f32 %v127, %v141
    %v144 = vmul.f32 %v128, %v142
    %v145 = vlaneseq
    %v146 = vshrl.u32 %v145, 7
    %v147 = vsub.s32 1, %v146
    %v148 = vrot.slane %v49, %v147
    %v149 = vmul.f32 %v143, %v148
    %v150 = vmul.f32 %v144, %v148
    %v151 = vlaneseq
    %v152 = vshrl.u32 %v151, 7
    %v153 = vsub.s32 2, %v152
    %v154 = vrot.slane %v49, %v153
    %v155 = vadd.f32 %v149, %v154
    %v156 = vadd.f32 %v150, %v154
    %v157 = vmul.f32 %v155, 0.5
    %v158 = vmul.f32 %v156, 0.5
    %v159 = vmul.f32 %v155, 0.70710677
    %v160 = vmul.f32 %v156, 0.70710677
    %v161 = verf.f32.pop %v159
    %v162 = verf.f32.pop %v160
    %v163 = vadd.f32 %v161, 1.0
    %v164 = vadd.f32 %v162, 1.0
    %v165 = vmul.f32 %v157, %v163
    %v166 = vmul.f32 %v158, %v164
    %v167 = vlaneseq
    %v168 = vshrl.u32 %v167, 7
    %v169 = vsub.s32 3, %v168
    %v170 = vrot.slane %v49, %v169
    %v171 = vmul.f32 %v165, %v170
    %v172 = vmul.f32 %v166, %v170
    %v173 = vsel %vm67, %v171, 0.0
    %174 = vadd.xlane.f32.xlu0 %v173
    %v175 = vpop.xlane.xlu0 %174
    %v176 = vsel %vm67, %v172, 0.0
    %177 = vadd.xlane.f32.xlu0 %v176
    %v178 = vpop.xlane.xlu0 %177
    %v179 = vld [vmem:[%s1] sm:$0x3]
    %vm180 = vcmp.eq.f32.partialorder %v179, 0.0
    %v183 = vlaneseq
    %v184 = vand.u32 %v183, 127
    %v185 = vlaneseq
    %v186 = vshrl.u32 %v185, 7
    %v187 = vsub.s32 %v184, %v186
    %v188 = vrot.slane %v175, %v187
    %v189 = vlaneseq
    %v190 = vshrl.u32 %v189, 7
    %v191 = vsub.s32 %v184, %v190
    %v192 = vrot.slane %v178, %v191
    %vm193 = vcmask 1041409
    %v194 = vsel %vm193, %v192, %v188
    %v196 = vsel %vm180, -inf, %v194
    %vm197 = vcmask 58368
    %v198 = vsel %vm197, %v196, -inf
    %199 = vmax.xlane.f32.xlu0 %v198
    %v200 = vpop.xlane.xlu0 %199
    %v201 = vsub.f32 %v196, %v200
    %v202 = vmul.f32 %v201, 1.442695
    %v203 = vpow.pop %v202
    %v204 = vsel %vm197, %v203, 0.0
    %205 = vadd.xlane.f32.xlu0 %v204
    %v206 = vpop.xlane.xlu0 %205
    %v207 = vrcp.pop %v206
    %v208 = vmul.f32 %v203, %v207
    %v209 = vlaneseq
    %v210 = vshrl.u32 %v209, 7
    %v211 = vsub.s32 0, %v210
    %v212 = vrot.slane %v208, %v211
    %214 = vbcast.lane.b32.xlu0 %v212, 256
    %v215 = vpop.permute.xlu0 %214
    %v216 = vlaneseq
    %v217 = vshrl.u32 %v216, 7
    %v218 = vsub.s32 1, %v217
    %v219 = vrot.slane %v208, %v218
    %221 = vbcast.lane.b32.xlu0 %v219, 256
    %v222 = vpop.permute.xlu0 %221
    %v223 = vmul.f32 %v215, %v47
    %v224 = vmul.f32 %v222, %v48
    %v225 = vsel %vm67, %v223, 0.0
    %v226 = vrot.slane %v225, 4
    %v227 = vadd.f32 %v225, %v226
    %v228 = vrot.slane %v227, 2
    %v229 = vadd.f32 %v227, %v228
    %v230 = vrot.slane %v229, 1
    %v231 = vadd.f32 %v229, %v230
    %v232 = vsel %vm67, %v224, 0.0
    %v233 = vrot.slane %v232, 4
    %v234 = vadd.f32 %v232, %v233
    %v235 = vrot.slane %v234, 2
    %v236 = vadd.f32 %v234, %v235
    %v237 = vrot.slane %v236, 1
    %v238 = vadd.f32 %v236, %v237
    %v241 = vsel %vm193, %v238, %v231
    %vm243 = vcmask 254976
    %244 = vst.msk [vmem:[#allocation7] sm:$0x3] %vm243, %v241
    // Predicated region
    $region26: #{tpu_custom_call.1} parent=1 // pred_check
      _
    $region27: #{tpu_custom_call.1} parent=1 // pred_check_branch
      %246 = sbr.rel (0) target = $region29
    $region28: #{tpu_custom_call.1} parent=1 // pred_region
      %s248 = ssub.s32 32, 32
      %249 = vsyncadd [#allocation4], %s248
      %s251 = sshll.u32 [#allocation7], 4
      %s252 = int_to_ptr.vmem [resolvable:$true] %s251
      %254 = dma.vmem_to_hbm [thread:$0]  %s252, 32, %s4, [#allocation4]
    $region29: #{tpu_custom_call.1} parent=1 // pred_fallthru
      _
    // Predicated region
    $region30: #{tpu_custom_call.1} parent=1 // pred_check
      _
    $region31: #{tpu_custom_call.1} parent=1 // pred_check_branch
      %256 = sbr.rel (0) target = $region33
    $region32: #{tpu_custom_call.1} parent=1 // pred_region
      %257 = dma.done [#allocation4], 32
    $region33: #{tpu_custom_call.1} parent=1 // pred_fallthru
      _
    %258 = vsyncpa [#allocation3], 1
    %259 = vsyncpa [#allocation6], 1
    %260 = vsyncpa [#allocation4], 1

</llo_original>
